<compile_context>
chip_gen: v7x
topology: tpu7x:2x2x1
jax: 0.10.0
libtpu: 0.0.40
codegen_flags: <defaults>
</compile_context>

<pallas_src>
import functools

import jax
import jax.numpy as jnp
import numpy as np
from jax.experimental import pallas as pl
from jax.experimental.pallas import tpu as pltpu

# k_size -> (conv0 kernel, conv_spatial kernel, dilation, paddings)
CONFIGS = {
    7:  dict(k0=3, ks=3,  dil=2, pad0=1, pads=2),
    11: dict(k0=3, ks=5,  dil=2, pad0=1, pads=4),
    23: dict(k0=5, ks=7,  dil=3, pad0=2, pads=9),
    35: dict(k0=5, ks=11, dil=3, pad0=2, pads=15),
    41: dict(k0=5, ks=13, dil=3, pad0=2, pads=18),
    53: dict(k0=5, ks=17, dil=3, pad0=2, pads=24),
}


def _round_up(x, m):
    return (x + m - 1) // m * m


def _default_compute_dtype():
    # bf16 depthwise slabs only where the VPU is bf16-native (v6e / v7x);
    # v5e and older keep f32 (casting there adds traffic with no VALU gain).
    kind = jax.devices()[0].device_kind.lower()
    if any(tag in kind for tag in ("v6", "v7", "7x")):
        return jnp.bfloat16
    return jnp.float32


def lska_kernel(x_ref, dwp_ref, w1t_ref, b1_ref, o_ref, *,
                W, HW, Cg, k0, ks, dil, pad0, pads, compute_dtype):
    # x_ref / o_ref : (1, Cpad, HWpad) f32, resident per batch element.
    # dwp_ref       : (Cg, P) f32 packed depthwise taps/biases for this group.
    # w1t_ref       : (Cg, Cpad) f32, transposed 1x1-conv weights (Cin slice).
    # b1_ref        : (Cpad, 1) f32.
    g = pl.program_id(1)
    ng = pl.num_programs(1)
    HWpad = x_ref.shape[-1]
    cdt = compute_dtype

    @pl.when(g == 0)
    def _():
        o_ref[...] = jnp.zeros_like(o_ref)      # f32 accumulator for the 1x1 conv

    # Lane-position helpers, computed in-kernel (no extra HBM input stream).
    jpos = jax.lax.broadcasted_iota(jnp.int32, (1, HWpad), 1)
    if (W & (W - 1)) == 0:
        wpos = jnp.bitwise_and(jpos, W - 1)     # j % W for power-of-two W
    else:
        jf = jpos.astype(jnp.float32)
        wpos = (jf - W * jnp.floor(jf * (1.0 / W))).astype(jnp.int32)

    # Channel group of the resident input slab, cast to the compute dtype.
    c0 = pl.multiple_of(g * Cg, Cg)
    xg = x_ref[0, pl.ds(c0, Cg), :].astype(cdt)             # (Cg, HWpad)

    # Unpack the packed depthwise params with static lane slices.
    dwp = dwp_ref[...]
    _pos = [0]

    def take(n):
        s = _pos[0]
        _pos[0] += n
        return dwp[:, s:s + n]

    w0h, b0h = take(k0), take(1)
    w0v, b0v = take(k0), take(1)
    wsh, bsh = take(ks), take(1)
    wsv, bsv = take(ks), take(1)

    def dw_conv(a, w, b, k, d, p, horizontal):
        # Depthwise "same" 1-D conv (dilation d, zero pad p) along W
        # (horizontal) or H (vertical) on the flattened (Cg, HWpad) slab.
        # Per-tap shifted window = XLU roll + select boundary mask; products
        # are in `cdt`, the tap accumulator stays f32.
        w = w.astype(cdt)
        acc = jnp.zeros(a.shape, jnp.float32)
        for t in range(k):
            off = t * d - p
            wt = w[:, t:t + 1]                              # (Cg, 1)
            if off == 0:
                acc = acc + wt * a
                continue
            if horizontal:
                lo, hi = max(0, -off), min(W, W - off)
                sel, shift = wpos, off
            else:
                shift = off * W
                lo, hi = max(0, -shift), min(HW, HW - shift)
                sel = jpos
            if hi <= lo:
                continue
            rolled = pltpu.roll(a, shift=(-shift) % HWpad, axis=1)
            win = jnp.where((sel >= lo) & (sel < hi), rolled, jnp.zeros((), cdt))
            acc = acc + wt * win
        return (acc + b).astype(cdt)                        # bias add in f32

    a = dw_conv(xg, w0h, b0h, k0, 1, pad0, True)            # conv0h
    a = dw_conv(a,  w0v, b0v, k0, 1, pad0, False)           # conv0v
    a = dw_conv(a,  wsh, bsh, ks, dil, pads, True)          # conv_spatial_h
    a = dw_conv(a,  wsv, bsv, ks, dil, pads, False)         # conv_spatial_v

    # Partial 1x1 pointwise conv on the MXU: bf16 operands (all chip
    # generations), f32 accumulation into the resident output block
    # (K-reduction over channel groups).
    w1g = w1t_ref[...].astype(jnp.bfloat16)                 # (Cg, Cpad)
    o_ref[0] += jax.lax.dot_general(
        w1g, a.astype(jnp.bfloat16),
        dimension_numbers=(((0,), (0,)), ((), ())),
        preferred_element_type=jnp.float32)                 # (Cpad, HWpad)

    @pl.when(g == ng - 1)
    def _():
        o_ref[0] = x_ref[0] * (o_ref[0] + b1_ref[...])      # u * attn


def lska_forward(x, params, k_size, compute_dtype=None):
    cfg = CONFIGS[k_size]
    k0, ks = cfg["k0"], cfg["ks"]
    B, C, H, W = x.shape
    HW = H * W
    Cpad = _round_up(C, 8)            # full sublanes
    HWpad = _round_up(HW, 128)        # lane-dense slabs / unmasked stores
    if compute_dtype is None:
        compute_dtype = _default_compute_dtype()

    # Channel-group size: full channels unless C is large enough that groups
    # keep the MXU K-fill >= 128 per step (group must divide Cpad).
    Cg = Cpad
    if Cpad > 128:
        for cand in (256, 128):
            if Cpad % cand == 0:
                Cg = cand
                break
    ncg = Cpad // Cg

    # Lane/sublane-padded, lane-dense input layout. Padded channels/lanes are
    # zero; boundary masks in the kernel never read padded lanes for valid
    # outputs, so no garbage leaks into real results.
    x2 = jnp.pad(x.reshape(B, C, HW).astype(jnp.float32),
                 ((0, 0), (0, Cpad - C), (0, HWpad - HW)))

    def pad_c(a):
        return jnp.pad(a.astype(jnp.float32), ((0, Cpad - C), (0, 0)))

    # One packed (Cpad, P) array for all depthwise taps + biases.
    dwp = jnp.concatenate([
        pad_c(params["w0h"]), pad_c(params["b0h"].reshape(C, 1)),
        pad_c(params["w0v"]), pad_c(params["b0v"].reshape(C, 1)),
        pad_c(params["wsh"]), pad_c(params["bsh"].reshape(C, 1)),
        pad_c(params["wsv"]), pad_c(params["bsv"].reshape(C, 1)),
    ], axis=1)
    P = dwp.shape[1]

    # 1x1 conv weights stored transposed (Cin_pad, Cout_pad) so the channel
    # group lives on the sublane axis of its BlockSpec.
    w1t = jnp.pad(params["w1"].astype(jnp.float32),
                  ((0, Cpad - C), (0, Cpad - C))).T
    b1 = jnp.pad(params["b1"].astype(jnp.float32), (0, Cpad - C)).reshape(Cpad, 1)

    x_spec = pl.BlockSpec((1, Cpad, HWpad), lambda b, g: (b, 0, 0))
    o_spec = pl.BlockSpec((1, Cpad, HWpad), lambda b, g: (b, 0, 0))
    dwp_spec = pl.BlockSpec((Cg, P), lambda b, g: (g, 0))
    w1t_spec = pl.BlockSpec((Cg, Cpad), lambda b, g: (g, 0))
    b1_spec = pl.BlockSpec((Cpad, 1), lambda b, g: (0, 0))

    # Explicit scoped-VMEM budget: double-buffered in/out slabs + depthwise
    # temporaries + small params, clamped to [32, 64] MiB (v7x-safe).
    slab = 4 * Cpad * HWpad
    gslab = 4 * Cg * HWpad
    need = 4 * slab + 8 * gslab + 2 * 4 * (Cg * P + Cg * Cpad + Cpad)
    vmem_limit = int(min(max(int(need * 1.5), 32 * 2**20), 64 * 2**20))

    kernel = functools.partial(
        lska_kernel, W=W, HW=HW, Cg=Cg, k0=k0, ks=ks,
        dil=cfg["dil"], pad0=cfg["pad0"], pads=cfg["pads"],
        compute_dtype=compute_dtype)

    out = pl.pallas_call(
        kernel,
        out_shape=jax.ShapeDtypeStruct((B, Cpad, HWpad), jnp.float32),
        grid=(B, ncg),
        in_specs=[x_spec, dwp_spec, w1t_spec, b1_spec],
        out_specs=o_spec,
        compiler_params=pltpu.CompilerParams(
            dimension_semantics=("parallel", "arbitrary"),
            vmem_limit_bytes=vmem_limit),
    )(x2, dwp, w1t, b1)
    return out[:, :C, :HW].reshape(B, C, H, W)


# ---------------- pure-JAX reference (same math, for a correctness check) ----------------
def _dw_conv_ref(x, w, b, k, d, p, axis):
    B, C, H, W = x.shape
    pads = [(0, 0)] * 4
    pads[axis] = (p, p)
    xp = jnp.pad(x, pads)
    out = jnp.zeros_like(x)
    for t in range(k):
        off = t * d
        if axis == 3:
            win = xp[:, :, :, off:off + W]
        else:
            win = xp[:, :, off:off + H, :]
        out = out + w[:, t][None, :, None, None] * win
    return out + b[None, :, None, None]


def lska_ref(x, params, k_size):
    cfg = CONFIGS[k_size]
    a = _dw_conv_ref(x, params["w0h"], params["b0h"], cfg["k0"], 1, cfg["pad0"], axis=3)
    a = _dw_conv_ref(a, params["w0v"], params["b0v"], cfg["k0"], 1, cfg["pad0"], axis=2)
    a = _dw_conv_ref(a, params["wsh"], params["bsh"], cfg["ks"], cfg["dil"], cfg["pads"], axis=3)
    a = _dw_conv_ref(a, params["wsv"], params["bsv"], cfg["ks"], cfg["dil"], cfg["pads"], axis=2)
    a = jnp.einsum("bchw,oc->bohw", a, params["w1"],
                   precision=jax.lax.Precision.HIGHEST) + params["b1"][None, :, None, None]
    return x * a


if __name__ == "__main__":
    B, C, H, W = 2, 4, 16, 16
    k_size = 7
    cfg = CONFIGS[k_size]

    key = jax.random.PRNGKey(0)
    keys = jax.random.split(key, 12)
    params = {
        "w0h": 0.3 * jax.random.normal(keys[0], (C, cfg["k0"]), jnp.float32),  # conv0h (C,1,1,k0) flattened
        "b0h": 0.1 * jax.random.normal(keys[1], (C,), jnp.float32),
        "w0v": 0.3 * jax.random.normal(keys[2], (C, cfg["k0"]), jnp.float32),  # conv0v (C,1,k0,1) flattened
        "b0v": 0.1 * jax.random.normal(keys[3], (C,), jnp.float32),
        "wsh": 0.3 * jax.random.normal(keys[4], (C, cfg["ks"]), jnp.float32),  # conv_spatial_h
        "bsh": 0.1 * jax.random.normal(keys[5], (C,), jnp.float32),
        "wsv": 0.3 * jax.random.normal(keys[6], (C, cfg["ks"]), jnp.float32),  # conv_spatial_v
        "bsv": 0.1 * jax.random.normal(keys[7], (C,), jnp.float32),
        "w1":  0.3 * jax.random.normal(keys[8], (C, C), jnp.float32),          # conv1 (C,C,1,1) flattened
        "b1":  0.1 * jax.random.normal(keys[9], (C,), jnp.float32),
    }
    x = jax.random.normal(keys[10], (B, C, H, W), jnp.float32)

    out = lska_forward(x, params, k_size)
    out = jax.block_until_ready(out)

    ref = jax.block_until_ready(lska_ref(x, params, k_size))
    # Tolerance covers the bf16 MXU 1x1 conv (all chips) and the bf16 depthwise
    # slab math on v6e/v7x (tap accumulators are f32, so error stays small).
    np.testing.assert_allclose(np.asarray(out), np.asarray(ref), rtol=2e-2, atol=2e-2)

    print("KERNEL_OK")
</pallas_src>

<mosaic_0001>
module attributes {stable_mosaic.version = 11 : i64} {
  func.func @lska_kernel(%arg0: i32, %arg1: i32, %arg2: memref<1x8x256xf32, #tpu.memory_space<vmem>>, %arg3: memref<8x16xf32, #tpu.memory_space<vmem>>, %arg4: memref<8x8xf32, #tpu.memory_space<vmem>>, %arg5: memref<8x1xf32, #tpu.memory_space<vmem>>, %arg6: memref<1x8x256xf32, #tpu.memory_space<vmem>>) attributes {dimension_semantics = [#tpu.dimension_semantics<parallel>, #tpu.dimension_semantics<arbitrary>], iteration_bounds = array<i64: 2, 1>, scalar_prefetch = 0 : i64, scratch_operands = 0 : i64, tpu.core_type = #tpu.core_type<tc>, window_params = [{transform_indices = @transform_0, window_bounds = array<i64: 1, 8, 256>}, {transform_indices = @transform_1, window_bounds = array<i64: 8, 16>}, {transform_indices = @transform_2, window_bounds = array<i64: 8, 8>}, {pipeline_mode = #tpu.pipeline_mode<synchronous>, transform_indices = @transform_3, window_bounds = array<i64: 8, 1>}, {transform_indices = @transform_4, window_bounds = array<i64: 1, 8, 256>}]} {
    %c0_i32 = arith.constant 0 : i32
    %0 = arith.cmpi eq, %arg1, %c0_i32 : i32
    %1 = arith.extui %0 : i1 to i32
    %c0_i32_0 = arith.constant 0 : i32
    %2 = arith.cmpi ne, %1, %c0_i32_0 : i32
    scf.if %2 {
      %cst_40 = arith.constant 0.000000e+00 : f32
      %173 = vector.broadcast %cst_40 : f32 to vector<1x8x256xf32>
      %c0_41 = arith.constant 0 : index
      %c0_42 = arith.constant 0 : index
      %c0_43 = arith.constant 0 : index
      %174 = vector.load %arg6[%c0_41, %c0_42, %c0_43] : memref<1x8x256xf32, #tpu.memory_space<vmem>>, vector<1x8x256xf32>
      tpu.vector_store %arg6[%c0_41, %c0_42, %c0_43], %173 {strides = array<i32>} : memref<1x8x256xf32, #tpu.memory_space<vmem>>, vector<1x8x256xf32>,
    } else {
    }
    %3 = tpu.iota {dimensions = array<i32: 1>} : vector<1x256xi32>
    %c15_i32 = arith.constant 15 : i32
    %4 = vector.broadcast %c15_i32 : i32 to vector<1x256xi32>
    %5 = arith.andi %3, %4 : vector<1x256xi32>
    %c8_i32 = arith.constant 8 : i32
    %6 = arith.muli %arg1, %c8_i32 : i32
    %7 = tpu.assume_multiple %6, 8 : i32
    %c0 = arith.constant 0 : index
    %8 = arith.index_cast %7 : i32 to index
    %c0_1 = arith.constant 0 : index
    %9 = vector.load %arg2[%c0, %8, %c0_1] : memref<1x8x256xf32, #tpu.memory_space<vmem>>, vector<1x8x256xf32>
    %10 = vector.shape_cast %9 : vector<1x8x256xf32> to vector<8x256xf32>
    %c0_2 = arith.constant 0 : index
    %c0_3 = arith.constant 0 : index
    %11 = vector.load %arg3[%c0_2, %c0_3] : memref<8x16xf32, #tpu.memory_space<vmem>>, vector<8x16xf32>
    %12 = vector.extract_strided_slice %11 {offsets = [0, 0], sizes = [8, 3], strides = [1, 1]} : vector<8x16xf32> to vector<8x3xf32>
    %13 = vector.extract_strided_slice %11 {offsets = [0, 3], sizes = [8, 1], strides = [1, 1]} : vector<8x16xf32> to vector<8x1xf32>
    %14 = vector.extract_strided_slice %11 {offsets = [0, 4], sizes = [8, 3], strides = [1, 1]} : vector<8x16xf32> to vector<8x3xf32>
    %15 = vector.extract_strided_slice %11 {offsets = [0, 7], sizes = [8, 1], strides = [1, 1]} : vector<8x16xf32> to vector<8x1xf32>
    %16 = vector.extract_strided_slice %11 {offsets = [0, 8], sizes = [8, 3], strides = [1, 1]} : vector<8x16xf32> to vector<8x3xf32>
    %17 = vector.extract_strided_slice %11 {offsets = [0, 11], sizes = [8, 1], strides = [1, 1]} : vector<8x16xf32> to vector<8x1xf32>
    %18 = vector.extract_strided_slice %11 {offsets = [0, 12], sizes = [8, 3], strides = [1, 1]} : vector<8x16xf32> to vector<8x3xf32>
    %19 = vector.extract_strided_slice %11 {offsets = [0, 15], sizes = [8, 1], strides = [1, 1]} : vector<8x16xf32> to vector<8x1xf32>
    %cst = arith.constant 0.000000e+00 : f32
    %20 = vector.broadcast %cst : f32 to vector<8x256xf32>
    %21 = vector.extract_strided_slice %12 {offsets = [0, 0], sizes = [8, 1], strides = [1, 1]} : vector<8x3xf32> to vector<8x1xf32>
    %c1_i32 = arith.constant 1 : i32
    %22 = tpu.dynamic_rotate %10 by %c1_i32 dim 1 : vector<8x256xf32>, i32 -> vector<8x256xf32>
    %c1_i32_4 = arith.constant 1 : i32
    %23 = vector.broadcast %c1_i32_4 : i32 to vector<1x256xi32>
    %24 = arith.cmpi sge, %5, %23 : vector<1x256xi32>
    %c16_i32 = arith.constant 16 : i32
    %25 = vector.broadcast %c16_i32 : i32 to vector<1x256xi32>
    %26 = arith.cmpi slt, %5, %25 : vector<1x256xi32>
    %27 = arith.andi %24, %26 : vector<1x256xi1>
    %cst_5 = arith.constant 0.000000e+00 : f32
    %28 = vector.shape_cast %27 : vector<1x256xi1> to vector<1x256xi1>
    %29 = vector.broadcast %28 : vector<1x256xi1> to vector<8x256xi1>
    %30 = vector.broadcast %cst_5 : f32 to vector<8x256xf32>
    %31 = arith.select %29, %22, %30 : vector<8x256xi1>, vector<8x256xf32>
    %32 = vector.broadcast %21 : vector<8x1xf32> to vector<8x256xf32>
    %33 = arith.mulf %32, %31 : vector<8x256xf32>
    %34 = arith.addf %20, %33 : vector<8x256xf32>
    %35 = vector.extract_strided_slice %12 {offsets = [0, 1], sizes = [8, 1], strides = [1, 1]} : vector<8x3xf32> to vector<8x1xf32>
    %36 = vector.broadcast %35 : vector<8x1xf32> to vector<8x256xf32>
    %37 = arith.mulf %36, %10 : vector<8x256xf32>
    %38 = arith.addf %34, %37 : vector<8x256xf32>
    %39 = vector.extract_strided_slice %12 {offsets = [0, 2], sizes = [8, 1], strides = [1, 1]} : vector<8x3xf32> to vector<8x1xf32>
    %c255_i32 = arith.constant 255 : i32
    %40 = tpu.dynamic_rotate %10 by %c255_i32 dim 1 : vector<8x256xf32>, i32 -> vector<8x256xf32>
    %c0_i32_6 = arith.constant 0 : i32
    %41 = vector.broadcast %c0_i32_6 : i32 to vector<1x256xi32>
    %42 = arith.cmpi sge, %5, %41 : vector<1x256xi32>
    %c15_i32_7 = arith.constant 15 : i32
    %43 = vector.broadcast %c15_i32_7 : i32 to vector<1x256xi32>
    %44 = arith.cmpi slt, %5, %43 : vector<1x256xi32>
    %45 = arith.andi %42, %44 : vector<1x256xi1>
    %cst_8 = arith.constant 0.000000e+00 : f32
    %46 = vector.shape_cast %45 : vector<1x256xi1> to vector<1x256xi1>
    %47 = vector.broadcast %46 : vector<1x256xi1> to vector<8x256xi1>
    %48 = vector.broadcast %cst_8 : f32 to vector<8x256xf32>
    %49 = arith.select %47, %40, %48 : vector<8x256xi1>, vector<8x256xf32>
    %50 = vector.broadcast %39 : vector<8x1xf32> to vector<8x256xf32>
    %51 = arith.mulf %50, %49 : vector<8x256xf32>
    %52 = arith.addf %38, %51 : vector<8x256xf32>
    %53 = vector.broadcast %13 : vector<8x1xf32> to vector<8x256xf32>
    %54 = arith.addf %52, %53 : vector<8x256xf32>
    %cst_9 = arith.constant 0.000000e+00 : f32
    %55 = vector.broadcast %cst_9 : f32 to vector<8x256xf32>
    %56 = vector.extract_strided_slice %14 {offsets = [0, 0], sizes = [8, 1], strides = [1, 1]} : vector<8x3xf32> to vector<8x1xf32>
    %c16_i32_10 = arith.constant 16 : i32
    %57 = tpu.dynamic_rotate %54 by %c16_i32_10 dim 1 : vector<8x256xf32>, i32 -> vector<8x256xf32>
    %c16_i32_11 = arith.constant 16 : i32
    %58 = vector.broadcast %c16_i32_11 : i32 to vector<1x256xi32>
    %59 = arith.cmpi sge, %3, %58 : vector<1x256xi32>
    %c256_i32 = arith.constant 256 : i32
    %60 = vector.broadcast %c256_i32 : i32 to vector<1x256xi32>
    %61 = arith.cmpi slt, %3, %60 : vector<1x256xi32>
    %62 = arith.andi %59, %61 : vector<1x256xi1>
    %cst_12 = arith.constant 0.000000e+00 : f32
    %63 = vector.shape_cast %62 : vector<1x256xi1> to vector<1x256xi1>
    %64 = vector.broadcast %63 : vector<1x256xi1> to vector<8x256xi1>
    %65 = vector.broadcast %cst_12 : f32 to vector<8x256xf32>
    %66 = arith.select %64, %57, %65 : vector<8x256xi1>, vector<8x256xf32>
    %67 = vector.broadcast %56 : vector<8x1xf32> to vector<8x256xf32>
    %68 = arith.mulf %67, %66 : vector<8x256xf32>
    %69 = arith.addf %55, %68 : vector<8x256xf32>
    %70 = vector.extract_strided_slice %14 {offsets = [0, 1], sizes = [8, 1], strides = [1, 1]} : vector<8x3xf32> to vector<8x1xf32>
    %71 = vector.broadcast %70 : vector<8x1xf32> to vector<8x256xf32>
    %72 = arith.mulf %71, %54 : vector<8x256xf32>
    %73 = arith.addf %69, %72 : vector<8x256xf32>
    %74 = vector.extract_strided_slice %14 {offsets = [0, 2], sizes = [8, 1], strides = [1, 1]} : vector<8x3xf32> to vector<8x1xf32>
    %c240_i32 = arith.constant 240 : i32
    %75 = tpu.dynamic_rotate %54 by %c240_i32 dim 1 : vector<8x256xf32>, i32 -> vector<8x256xf32>
    %c0_i32_13 = arith.constant 0 : i32
    %76 = vector.broadcast %c0_i32_13 : i32 to vector<1x256xi32>
    %77 = arith.cmpi sge, %3, %76 : vector<1x256xi32>
    %c240_i32_14 = arith.constant 240 : i32
    %78 = vector.broadcast %c240_i32_14 : i32 to vector<1x256xi32>
    %79 = arith.cmpi slt, %3, %78 : vector<1x256xi32>
    %80 = arith.andi %77, %79 : vector<1x256xi1>
    %cst_15 = arith.constant 0.000000e+00 : f32
    %81 = vector.shape_cast %80 : vector<1x256xi1> to vector<1x256xi1>
    %82 = vector.broadcast %81 : vector<1x256xi1> to vector<8x256xi1>
    %83 = vector.broadcast %cst_15 : f32 to vector<8x256xf32>
    %84 = arith.select %82, %75, %83 : vector<8x256xi1>, vector<8x256xf32>
    %85 = vector.broadcast %74 : vector<8x1xf32> to vector<8x256xf32>
    %86 = arith.mulf %85, %84 : vector<8x256xf32>
    %87 = arith.addf %73, %86 : vector<8x256xf32>
    %88 = vector.broadcast %15 : vector<8x1xf32> to vector<8x256xf32>
    %89 = arith.addf %87, %88 : vector<8x256xf32>
    %cst_16 = arith.constant 0.000000e+00 : f32
    %90 = vector.broadcast %cst_16 : f32 to vector<8x256xf32>
    %91 = vector.extract_strided_slice %16 {offsets = [0, 0], sizes = [8, 1], strides = [1, 1]} : vector<8x3xf32> to vector<8x1xf32>
    %c2_i32 = arith.constant 2 : i32
    %92 = tpu.dynamic_rotate %89 by %c2_i32 dim 1 : vector<8x256xf32>, i32 -> vector<8x256xf32>
    %c2_i32_17 = arith.constant 2 : i32
    %93 = vector.broadcast %c2_i32_17 : i32 to vector<1x256xi32>
    %94 = arith.cmpi sge, %5, %93 : vector<1x256xi32>
    %c16_i32_18 = arith.constant 16 : i32
    %95 = vector.broadcast %c16_i32_18 : i32 to vector<1x256xi32>
    %96 = arith.cmpi slt, %5, %95 : vector<1x256xi32>
    %97 = arith.andi %94, %96 : vector<1x256xi1>
    %cst_19 = arith.constant 0.000000e+00 : f32
    %98 = vector.shape_cast %97 : vector<1x256xi1> to vector<1x256xi1>
    %99 = vector.broadcast %98 : vector<1x256xi1> to vector<8x256xi1>
    %100 = vector.broadcast %cst_19 : f32 to vector<8x256xf32>
    %101 = arith.select %99, %92, %100 : vector<8x256xi1>, vector<8x256xf32>
    %102 = vector.broadcast %91 : vector<8x1xf32> to vector<8x256xf32>
    %103 = arith.mulf %102, %101 : vector<8x256xf32>
    %104 = arith.addf %90, %103 : vector<8x256xf32>
    %105 = vector.extract_strided_slice %16 {offsets = [0, 1], sizes = [8, 1], strides = [1, 1]} : vector<8x3xf32> to vector<8x1xf32>
    %106 = vector.broadcast %105 : vector<8x1xf32> to vector<8x256xf32>
    %107 = arith.mulf %106, %89 : vector<8x256xf32>
    %108 = arith.addf %104, %107 : vector<8x256xf32>
    %109 = vector.extract_strided_slice %16 {offsets = [0, 2], sizes = [8, 1], strides = [1, 1]} : vector<8x3xf32> to vector<8x1xf32>
    %c254_i32 = arith.constant 254 : i32
    %110 = tpu.dynamic_rotate %89 by %c254_i32 dim 1 : vector<8x256xf32>, i32 -> vector<8x256xf32>
    %c0_i32_20 = arith.constant 0 : i32
    %111 = vector.broadcast %c0_i32_20 : i32 to vector<1x256xi32>
    %112 = arith.cmpi sge, %5, %111 : vector<1x256xi32>
    %c14_i32 = arith.constant 14 : i32
    %113 = vector.broadcast %c14_i32 : i32 to vector<1x256xi32>
    %114 = arith.cmpi slt, %5, %113 : vector<1x256xi32>
    %115 = arith.andi %112, %114 : vector<1x256xi1>
    %cst_21 = arith.constant 0.000000e+00 : f32
    %116 = vector.shape_cast %115 : vector<1x256xi1> to vector<1x256xi1>
    %117 = vector.broadcast %116 : vector<1x256xi1> to vector<8x256xi1>
    %118 = vector.broadcast %cst_21 : f32 to vector<8x256xf32>
    %119 = arith.select %117, %110, %118 : vector<8x256xi1>, vector<8x256xf32>
    %120 = vector.broadcast %109 : vector<8x1xf32> to vector<8x256xf32>
    %121 = arith.mulf %120, %119 : vector<8x256xf32>
    %122 = arith.addf %108, %121 : vector<8x256xf32>
    %123 = vector.broadcast %17 : vector<8x1xf32> to vector<8x256xf32>
    %124 = arith.addf %122, %123 : vector<8x256xf32>
    %cst_22 = arith.constant 0.000000e+00 : f32
    %125 = vector.broadcast %cst_22 : f32 to vector<8x256xf32>
    %126 = vector.extract_strided_slice %18 {offsets = [0, 0], sizes = [8, 1], strides = [1, 1]} : vector<8x3xf32> to vector<8x1xf32>
    %c32_i32 = arith.constant 32 : i32
    %127 = tpu.dynamic_rotate %124 by %c32_i32 dim 1 : vector<8x256xf32>, i32 -> vector<8x256xf32>
    %c32_i32_23 = arith.constant 32 : i32
    %128 = vector.broadcast %c32_i32_23 : i32 to vector<1x256xi32>
    %129 = arith.cmpi sge, %3, %128 : vector<1x256xi32>
    %c256_i32_24 = arith.constant 256 : i32
    %130 = vector.broadcast %c256_i32_24 : i32 to vector<1x256xi32>
    %131 = arith.cmpi slt, %3, %130 : vector<1x256xi32>
    %132 = arith.andi %129, %131 : vector<1x256xi1>
    %cst_25 = arith.constant 0.000000e+00 : f32
    %133 = vector.shape_cast %132 : vector<1x256xi1> to vector<1x256xi1>
    %134 = vector.broadcast %133 : vector<1x256xi1> to vector<8x256xi1>
    %135 = vector.broadcast %cst_25 : f32 to vector<8x256xf32>
    %136 = arith.select %134, %127, %135 : vector<8x256xi1>, vector<8x256xf32>
    %137 = vector.broadcast %126 : vector<8x1xf32> to vector<8x256xf32>
    %138 = arith.mulf %137, %136 : vector<8x256xf32>
    %139 = arith.addf %125, %138 : vector<8x256xf32>
    %140 = vector.extract_strided_slice %18 {offsets = [0, 1], sizes = [8, 1], strides = [1, 1]} : vector<8x3xf32> to vector<8x1xf32>
    %141 = vector.broadcast %140 : vector<8x1xf32> to vector<8x256xf32>
    %142 = arith.mulf %141, %124 : vector<8x256xf32>
    %143 = arith.addf %139, %142 : vector<8x256xf32>
    %144 = vector.extract_strided_slice %18 {offsets = [0, 2], sizes = [8, 1], strides = [1, 1]} : vector<8x3xf32> to vector<8x1xf32>
    %c224_i32 = arith.constant 224 : i32
    %145 = tpu.dynamic_rotate %124 by %c224_i32 dim 1 : vector<8x256xf32>, i32 -> vector<8x256xf32>
    %c0_i32_26 = arith.constant 0 : i32
    %146 = vector.broadcast %c0_i32_26 : i32 to vector<1x256xi32>
    %147 = arith.cmpi sge, %3, %146 : vector<1x256xi32>
    %c224_i32_27 = arith.constant 224 : i32
    %148 = vector.broadcast %c224_i32_27 : i32 to vector<1x256xi32>
    %149 = arith.cmpi slt, %3, %148 : vector<1x256xi32>
    %150 = arith.andi %147, %149 : vector<1x256xi1>
    %cst_28 = arith.constant 0.000000e+00 : f32
    %151 = vector.shape_cast %150 : vector<1x256xi1> to vector<1x256xi1>
    %152 = vector.broadcast %151 : vector<1x256xi1> to vector<8x256xi1>
    %153 = vector.broadcast %cst_28 : f32 to vector<8x256xf32>
    %154 = arith.select %152, %145, %153 : vector<8x256xi1>, vector<8x256xf32>
    %155 = vector.broadcast %144 : vector<8x1xf32> to vector<8x256xf32>
    %156 = arith.mulf %155, %154 : vector<8x256xf32>
    %157 = arith.addf %143, %156 : vector<8x256xf32>
    %158 = vector.broadcast %19 : vector<8x1xf32> to vector<8x256xf32>
    %159 = arith.addf %157, %158 : vector<8x256xf32>
    %c0_29 = arith.constant 0 : index
    %c0_30 = arith.constant 0 : index
    %160 = vector.load %arg4[%c0_29, %c0_30] : memref<8x8xf32, #tpu.memory_space<vmem>>, vector<8x8xf32>
    %161 = arith.truncf %160 : vector<8x8xf32> to vector<8x8xbf16>
    %c0_31 = arith.constant 0 : index
    %c0_32 = arith.constant 0 : index
    %c0_33 = arith.constant 0 : index
    %162 = vector.load %arg6[%c0_31, %c0_32, %c0_33] : memref<1x8x256xf32, #tpu.memory_space<vmem>>, vector<1x8x256xf32>
    %163 = vector.shape_cast %162 : vector<1x8x256xf32> to vector<8x256xf32>
    %164 = arith.truncf %159 : vector<8x256xf32> to vector<8x256xbf16>
    %cst_34 = arith.constant dense<0.000000e+00> : vector<8x256xf32>
    %165 = tpu.matmul %161, %164, %cst_34 {dimension_numbers = #tpu.dot_dimension_numbers<[0], [0], [1], [1], [0, 1, 1, 1], [], []>} : vector<8x8xbf16>, vector<8x256xbf16>, vector<8x256xf32> -> vector<8x256xf32>
    %166 = arith.addf %163, %165 : vector<8x256xf32>
    %c0_35 = arith.constant 0 : index
    %c0_36 = arith.constant 0 : index
    %c0_37 = arith.constant 0 : index
    %167 = vector.load %arg6[%c0_35, %c0_36, %c0_37] : memref<1x8x256xf32, #tpu.memory_space<vmem>>, vector<1x8x256xf32>
    %168 = vector.shape_cast %167 : vector<1x8x256xf32> to vector<8x256xf32>
    %169 = vector.shape_cast %166 : vector<8x256xf32> to vector<1x8x256xf32>
    tpu.vector_store %arg6[%c0_35, %c0_36, %c0_37], %169 {strides = array<i32>} : memref<1x8x256xf32, #tpu.memory_space<vmem>>, vector<1x8x256xf32>,
    %c0_i32_38 = arith.constant 0 : i32
    %170 = arith.cmpi eq, %arg1, %c0_i32_38 : i32
    %171 = arith.extui %170 : i1 to i32
    %c0_i32_39 = arith.constant 0 : i32
    %172 = arith.cmpi ne, %171, %c0_i32_39 : i32
    scf.if %172 {
      %c0_40 = arith.constant 0 : index
      %c0_41 = arith.constant 0 : index
      %c0_42 = arith.constant 0 : index
      %173 = vector.load %arg2[%c0_40, %c0_41, %c0_42] : memref<1x8x256xf32, #tpu.memory_space<vmem>>, vector<1x8x256xf32>
      %174 = vector.shape_cast %173 : vector<1x8x256xf32> to vector<8x256xf32>
      %c0_43 = arith.constant 0 : index
      %c0_44 = arith.constant 0 : index
      %c0_45 = arith.constant 0 : index
      %175 = vector.load %arg6[%c0_43, %c0_44, %c0_45] : memref<1x8x256xf32, #tpu.memory_space<vmem>>, vector<1x8x256xf32>
      %176 = vector.shape_cast %175 : vector<1x8x256xf32> to vector<8x256xf32>
      %c0_46 = arith.constant 0 : index
      %c0_47 = arith.constant 0 : index
      %177 = vector.load %arg5[%c0_46, %c0_47] : memref<8x1xf32, #tpu.memory_space<vmem>>, vector<8x1xf32>
      %178 = vector.broadcast %177 : vector<8x1xf32> to vector<8x256xf32>
      %179 = arith.addf %176, %178 : vector<8x256xf32>
      %180 = arith.mulf %174, %179 : vector<8x256xf32>
      %c0_48 = arith.constant 0 : index
      %c0_49 = arith.constant 0 : index
      %c0_50 = arith.constant 0 : index
      %181 = vector.load %arg6[%c0_48, %c0_49, %c0_50] : memref<1x8x256xf32, #tpu.memory_space<vmem>>, vector<1x8x256xf32>
      %182 = vector.shape_cast %181 : vector<1x8x256xf32> to vector<8x256xf32>
      %183 = vector.shape_cast %180 : vector<8x256xf32> to vector<1x8x256xf32>
      tpu.vector_store %arg6[%c0_48, %c0_49, %c0_50], %183 {strides = array<i32>} : memref<1x8x256xf32, #tpu.memory_space<vmem>>, vector<1x8x256xf32>,
    } else {
    }
    return
  }
  func.func @transform_0(%arg0: i32, %arg1: i32) -> (i32, i32, i32) {
    %c0_i32 = arith.constant 0 : i32
    %c0_i32_0 = arith.constant 0 : i32
    %c0_i32_1 = arith.constant 0 : i32
    return %arg0, %c0_i32, %c0_i32_0 : i32, i32, i32
  }
  func.func @transform_1(%arg0: i32, %arg1: i32) -> (i32, i32) {
    %c0_i32 = arith.constant 0 : i32
    %c0_i32_0 = arith.constant 0 : i32
    return %arg1, %c0_i32 : i32, i32
  }
  func.func @transform_2(%arg0: i32, %arg1: i32) -> (i32, i32) {
    %c0_i32 = arith.constant 0 : i32
    %c0_i32_0 = arith.constant 0 : i32
    return %arg1, %c0_i32 : i32, i32
  }
  func.func @transform_3(%arg0: i32, %arg1: i32) -> (i32, i32) {
    %c0_i32 = arith.constant 0 : i32
    %c0_i32_0 = arith.constant 0 : i32
    %c0_i32_1 = arith.constant 0 : i32
    return %c0_i32, %c0_i32_0 : i32, i32
  }
  func.func @transform_4(%arg0: i32, %arg1: i32) -> (i32, i32, i32) {
    %c0_i32 = arith.constant 0 : i32
    %c0_i32_0 = arith.constant 0 : i32
    %c0_i32_1 = arith.constant 0 : i32
    return %arg0, %c0_i32, %c0_i32_0 : i32, i32, i32
  }
}

</mosaic_0001>

<llo_original>
// kernel: tpu_custom_call.1
$region0: #{tpu_custom_call.1}
  #allocation0 [shape = 'u32[]', space=smem, size = 0x4, offset = 0x4, fixed_abs, tag = 'smem constant byte address 0x4 - core index']
  #allocation1 [shape = 'u32[144,128]{1,0:T(1,128)}', space=vmem, size = 0x12000, scoped, tag = 'internal scratch']
  %s0 = inlined_call_operand.hbm [shape: f32[2,8,256], index: 0, kind: input, shape index: {}]
  %s1 = inlined_call_operand.vmem [shape: f32[8,16], index: 1, kind: input, shape index: {}]
  %s2 = inlined_call_operand.vmem [shape: f32[8,8], index: 2, kind: input, shape index: {}]
  %s3 = inlined_call_operand.vmem [shape: f32[8,1], index: 3, kind: input, shape index: {}]
  %s4 = inlined_call_operand.hbm [shape: f32[2,8,256], index: 4, kind: output, shape index: {}]
  %s5 = sld [smem:[#allocation0]]
  $region61: #{tpu_custom_call.1} parent=0
    _
  %s7 = ssub.s32 1, %s5
  %s8 = scalar_select 0, %s7, %s5
  $region1: #{tpu_custom_call.1} parent=0
    #allocation2 [shape = 'u8[16384]{0}', space=vmem, size = 0x4000, scoped, tag = 'input window, operand 0']
    #allocation3 [shape = 's32[2]{0}', space=sflag, size = 0x8, scoped, tag = 'scoped memory for tpu_custom_call.1']
    #allocation4 [shape = 's32[2]{0}', space=sflag, size = 0x8, scoped, tag = 'scoped memory for tpu_custom_call.1']
    #allocation5 [shape = 'u8[16384]{0}', space=vmem, size = 0x4000, scoped, tag = 'output window, operand 0']
    %9 = vsyncpa [#allocation3], 0
    %s10 = scalar_lea.sflag [#allocation3], 1
    %11 = vsyncpa %s10, 0
    %12 = vsyncpa [#allocation4], 0
    %s13 = scalar_lea.sflag [#allocation4], 1
    %14 = vsyncpa %s13, 0
    loop: start=0, step=1, limit=4
    $region2: #{tpu_custom_call.1} parent=1 // loop_pre_header
      _
    $region3: #{tpu_custom_call.1} parent=1 // loop_header
      %s16 = sphi 0, %s20
      %p17 = scmp.ge.s32.totalorder %s16, 4
      %s23 = sphi 0, %s35
      %s24 = sphi 0, %s31
      %s25 = sphi 0, %s23
      %s26 = sphi 0, %s24
      %s27 = sphi 0, %s25
      %s28 = sphi 0, %s26
      %s38 = sphi 0, %s40
      %s41 = sphi 0, %s38
      %s42 = sphi 0, %s41
      %s58 = sphi 0, %s42
      %s64 = sphi 0, %s66
      %s67 = sphi 0, %s64
      %s68 = sphi 0, %s67
      %s84 = sphi 0, %s68
      %s90 = sphi 0, %s92
      %s93 = sphi 0, %s90
      %s94 = sphi 0, %s93
      %s110 = sphi 0, %s94
      %s114 = sphi 0, %s114
      %s116 = sphi 0, %s114
      %s117 = sphi 0, %s116
      %s131 = sphi 0, %s117
      %s137 = sphi 0, %s139
      %s140 = sphi 0, %s137
      %s141 = sphi 0, %s140
      %s157 = sphi 0, %s141
    $region4: #{tpu_custom_call.1} parent=1 // loop_header_branch
      %19 = sbr.rel (%p17) target = $region8
    $region5: #{tpu_custom_call.1} parent=1 // loop_body
      %s21 = ssub.s32 %s16, 1
      %s22 = ssub.s32 %s16, 2
      %s29 = sadd.s32 1, %s24
      %p30 = scmp.ge.s32.totalorder %s29, 1
      %s31 = scalar_select %p30, 0, %s29
      %s32 = sadd.s32 1, %s23
      %s33 = scalar_select %p30, %s32, %s23
      %p34 = scmp.ge.s32.totalorder %s33, 2
      %s35 = scalar_select %p34, 0, %s33
      %s36 = ssub.s32 %s23, %s35
      %p37 = scmp.eq.s32.totalorder %s36, 0
      %s39 = sadd.s32 %s38, 1
      %s40 = scalar_select %p37, %s38, %s39
      %p43 = pneg %p37
      %p44 = scmp.eq.s32.totalorder %s16, 1
      %p45 = por %p43, %p44
      %p46 = scmp.ne.s32.totalorder %s38, %s41
      %p47 = scmp.eq.s32.totalorder %s16, 0
      %p48 = por %p46, %p47
      %p49 = scmp.ne.s32.totalorder %s38, %s41
      %p50 = scmp.eq.s32.totalorder %s21, 1
      %p51 = por %p49, %p50
      %p52 = scmp.ne.s32.totalorder %s41, %s42
      %p53 = scmp.eq.s32.totalorder %s21, 0
      %p54 = por %p52, %p53
      %p55 = scmp.ne.s32.totalorder %s41, %s42
      %p56 = scmp.eq.s32.totalorder %s22, 1
      %p57 = por %p55, %p56
      %p59 = scmp.ne.s32.totalorder %s42, %s58
      %p60 = scmp.eq.s32.totalorder %s22, 0
      %p61 = por %p59, %p60
      %s62 = ssub.s32 %s24, %s31
      %p63 = scmp.eq.s32.totalorder %s62, 0
      %s65 = sadd.s32 %s64, 1
      %s66 = scalar_select %p63, %s64, %s65
      %p69 = pneg %p63
      %p70 = scmp.eq.s32.totalorder %s16, 1
      %p71 = por %p69, %p70
      %p72 = scmp.ne.s32.totalorder %s64, %s67
      %p73 = scmp.eq.s32.totalorder %s16, 0
      %p74 = por %p72, %p73
      %p75 = scmp.ne.s32.totalorder %s64, %s67
      %p76 = scmp.eq.s32.totalorder %s21, 1
      %p77 = por %p75, %p76
      %p78 = scmp.ne.s32.totalorder %s67, %s68
      %p79 = scmp.eq.s32.totalorder %s21, 0
      %p80 = por %p78, %p79
      %p81 = scmp.ne.s32.totalorder %s67, %s68
      %p82 = scmp.eq.s32.totalorder %s22, 1
      %p83 = por %p81, %p82
      %p85 = scmp.ne.s32.totalorder %s68, %s84
      %p86 = scmp.eq.s32.totalorder %s22, 0
      %p87 = por %p85, %p86
      %s88 = ssub.s32 %s24, %s31
      %p89 = scmp.eq.s32.totalorder %s88, 0
      %s91 = sadd.s32 %s90, 1
      %s92 = scalar_select %p89, %s90, %s91
      %p95 = pneg %p89
      %p96 = scmp.eq.s32.totalorder %s16, 1
      %p97 = por %p95, %p96
      %p98 = scmp.ne.s32.totalorder %s90, %s93
      %p99 = scmp.eq.s32.totalorder %s16, 0
      %p100 = por %p98, %p99
      %p101 = scmp.ne.s32.totalorder %s90, %s93
      %p102 = scmp.eq.s32.totalorder %s21, 1
      %p103 = por %p101, %p102
      %p104 = scmp.ne.s32.totalorder %s93, %s94
      %p105 = scmp.eq.s32.totalorder %s21, 0
      %p106 = por %p104, %p105
      %p107 = scmp.ne.s32.totalorder %s93, %s94
      %p108 = scmp.eq.s32.totalorder %s22, 1
      %p109 = por %p107, %p108
      %p111 = scmp.ne.s32.totalorder %s94, %s110
      %p112 = scmp.eq.s32.totalorder %s22, 0
      %p113 = por %p111, %p112
      %s115 = sadd.s32 %s114, 1
      %p118 = scmp.eq.s32.totalorder %s16, 1
      %p119 = scmp.ne.s32.totalorder %s114, %s116
      %p120 = scmp.eq.s32.totalorder %s16, 0
      %p121 = por %p119, %p120
      %p122 = scmp.ne.s32.totalorder %s114, %s116
      %p123 = scmp.eq.s32.totalorder %s21, 1
      %p124 = por %p122, %p123
      %p125 = scmp.ne.s32.totalorder %s116, %s117
      %p126 = scmp.eq.s32.totalorder %s21, 0
      %p127 = por %p125, %p126
      %p128 = scmp.ne.s32.totalorder %s116, %s117
      %p129 = scmp.eq.s32.totalorder %s22, 1
      %p130 = por %p128, %p129
      %p132 = scmp.ne.s32.totalorder %s117, %s131
      %p133 = scmp.eq.s32.totalorder %s22, 0
      %p134 = por %p132, %p133
      %s135 = ssub.s32 %s23, %s35
      %p136 = scmp.eq.s32.totalorder %s135, 0
      %s138 = sadd.s32 %s137, 1
      %s139 = scalar_select %p136, %s137, %s138
      %p142 = pneg %p136
      %p143 = scmp.eq.s32.totalorder %s16, 1
      %p144 = por %p142, %p143
      %p145 = scmp.ne.s32.totalorder %s137, %s140
      %p146 = scmp.eq.s32.totalorder %s16, 0
      %p147 = por %p145, %p146
      %p148 = scmp.ne.s32.totalorder %s137, %s140
      %p149 = scmp.eq.s32.totalorder %s21, 1
      %p150 = por %p148, %p149
      %p151 = scmp.ne.s32.totalorder %s140, %s141
      %p152 = scmp.eq.s32.totalorder %s21, 0
      %p153 = por %p151, %p152
      %p154 = scmp.ne.s32.totalorder %s140, %s141
      %p155 = scmp.eq.s32.totalorder %s22, 1
      %p156 = por %p154, %p155
      %p158 = scmp.ne.s32.totalorder %s141, %s157
      %p159 = scmp.eq.s32.totalorder %s22, 0
      %p160 = por %p158, %p159
      %p161 = scmp.le.s32.totalorder 1, %s16
      %p162 = scmp.lt.s32.totalorder %s16, 3
      %p163 = pnand %p161, %p162
      %p164 = pneg %p163
      // Predicated region
      $region9: #{tpu_custom_call.1} parent=5 // pred_check
        _
      $region10: #{tpu_custom_call.1} parent=5 // pred_check_branch
        %166 = sbr.rel (%p163) target = $region12
      $region11: #{tpu_custom_call.1} parent=5 // pred_region
        %s167 = ssub.s32 %s16, 1
        // Predicated region
        $region13: #{tpu_custom_call.1} parent=11 // pred_check
          %p168 = pneg %p80
        $region14: #{tpu_custom_call.1} parent=11 // pred_check_branch
          %170 = sbr.rel (%p168) target = $region16
        $region15: #{tpu_custom_call.1} parent=11 // pred_region
          %p171 = scmp.lt.s32.totalorder %s26, 0
          %s172 = scalar_select %p171, %s26, 0
          %s173 = smul.addr %s172, 8
          %s174 = scalar_lea.vmem %s1, %s173
        $region16: #{tpu_custom_call.1} parent=11 // pred_fallthru
          _
        // Predicated region
        $region17: #{tpu_custom_call.1} parent=11 // pred_check
          %p175 = pneg %p106
        $region18: #{tpu_custom_call.1} parent=11 // pred_check_branch
          %177 = sbr.rel (%p175) target = $region20
        $region19: #{tpu_custom_call.1} parent=11 // pred_region
          %p178 = scmp.lt.s32.totalorder %s26, 0
          %s179 = scalar_select %p178, %s26, 0
          %s180 = smul.addr %s179, 8
          %s181 = scalar_lea.vmem %s2, %s180
        $region20: #{tpu_custom_call.1} parent=11 // pred_fallthru
          _
        // Predicated region
        $region21: #{tpu_custom_call.1} parent=11 // pred_check
          %p182 = pneg %p127
        $region22: #{tpu_custom_call.1} parent=11 // pred_check_branch
          %184 = sbr.rel (%p182) target = $region24
        $region23: #{tpu_custom_call.1} parent=11 // pred_region
          _
        $region24: #{tpu_custom_call.1} parent=11 // pred_fallthru
          _
      $region12: #{tpu_custom_call.1} parent=5 // pred_fallthru
        _
      %p185 = scmp.lt.s32.totalorder %s16, 2
      // Predicated region
      $region25: #{tpu_custom_call.1} parent=5 // pred_check
        %p186 = pneg %p185
      $region26: #{tpu_custom_call.1} parent=5 // pred_check_branch
        %188 = sbr.rel (%p186) target = $region28
      $region27: #{tpu_custom_call.1} parent=5 // pred_region
        // Predicated region
        $region29: #{tpu_custom_call.1} parent=27 // pred_check
          %p189 = pneg %p48
        $region30: #{tpu_custom_call.1} parent=27 // pred_check_branch
          %191 = sbr.rel (%p189) target = $region32
        $region31: #{tpu_custom_call.1} parent=27 // pred_region
          %s192 = sand.u32 %s38, 1
          %s193 = scalar_lea.sflag [#allocation3], %s192
          %s194 = sand.u32 %s38, 1
          %s195 = smul.addr %s194, 16
          %s196 = scalar_lea.vmem [#allocation2], %s195
          %s198 = ssub.s32 256, 256
          %199 = vsyncadd %s193, %s198
          %s200 = smul.addr %s23, 2
          %s201 = smul.addr %s200, 128
          %s202 = scalar_lea.hbm %s0, %s201
          %s204 = sshll.u32 %s196, 4
          %s205 = int_to_ptr.vmem [resolvable:$true] %s204
          %207 = dma.hbm_to_vmem [thread:$0]  %s202, 256, %s205, %s193
        $region32: #{tpu_custom_call.1} parent=27 // pred_fallthru
          _
      $region28: #{tpu_custom_call.1} parent=5 // pred_fallthru
        _
      %p208 = scmp.le.s32.totalorder 1, %s16
      %p209 = scmp.lt.s32.totalorder %s16, 3
      %p210 = pnand %p208, %p209
      %p211 = pneg %p210
      // Predicated region
      $region33: #{tpu_custom_call.1} parent=5 // pred_check
        _
      $region34: #{tpu_custom_call.1} parent=5 // pred_check_branch
        %213 = sbr.rel (%p210) target = $region36
      $region35: #{tpu_custom_call.1} parent=5 // pred_region
        %s214 = ssub.s32 %s16, 1
        %s215 = sand.u32 %s41, 1
        %s216 = scalar_lea.sflag [#allocation3], %s215
        %s217 = sand.u32 %s41, 1
        %s218 = smul.addr %s217, 16
        %s219 = scalar_lea.vmem [#allocation2], %s218
        // Predicated region
        $region37: #{tpu_custom_call.1} parent=35 // pred_check
          %p220 = pneg %p54
        $region38: #{tpu_custom_call.1} parent=35 // pred_check_branch
          %222 = sbr.rel (%p220) target = $region40
        $region39: #{tpu_custom_call.1} parent=35 // pred_region
          %223 = dma.done %s216, 256
        $region40: #{tpu_custom_call.1} parent=35 // pred_fallthru
          _
        %s224 = sand.u32 %s41, 1
        %s225 = scalar_lea.sflag [#allocation3], %s224
        %s226 = sand.u32 %s41, 1
        %s227 = smul.addr %s226, 16
        %s228 = scalar_lea.vmem [#allocation2], %s227
        %p229 = pneg %p54
        %p230 = pneg %p51
        %p231 = scmp.lt.s32.totalorder %s26, 0
        %s232 = scalar_select %p231, %s26, 0
        %s233 = smul.addr %s232, 8
        %s234 = scalar_lea.vmem %s1, %s233
        %p235 = pneg %p80
        %p236 = pneg %p77
        %p237 = scmp.lt.s32.totalorder %s26, 0
        %s238 = scalar_select %p237, %s26, 0
        %s239 = smul.addr %s238, 8
        %s240 = scalar_lea.vmem %s2, %s239
        %p241 = pneg %p106
        %p242 = pneg %p103
        %p243 = pneg %p127
        %p244 = pneg %p124
        %p245 = pneg %p153
        %p246 = pneg %p150
        %s247 = sand.u32 %s140, 1
        %s248 = scalar_lea.sflag [#allocation4], %s247
        %s249 = sand.u32 %s140, 1
        %s250 = smul.addr %s249, 16
        %s251 = scalar_lea.vmem [#allocation5], %s250
        %p252 = scmp.lt.s32.totalorder %s26, 0
        %s253 = scalar_select %p252, %s26, 0
        %s254 = smul.addr %s253, 8
        %s255 = scalar_lea.vmem %s1, %s254
        %p256 = scmp.lt.s32.totalorder %s26, 0
        %s257 = scalar_select %p256, %s26, 0
        %s258 = smul.addr %s257, 8
        %s259 = scalar_lea.vmem %s2, %s258
        %p261 = scmp.eq.s32.totalorder %s26, 0
        // Predicated region
        $region41: #{tpu_custom_call.1} parent=35 // pred_check
          %p262 = pneg %p261
        $region42: #{tpu_custom_call.1} parent=35 // pred_check_branch
          %264 = sbr.rel (%p262) target = $region44
        $region43: #{tpu_custom_call.1} parent=35 // pred_region
          %265 = vst [vmem:[%s251] sm:$0xff] 0.0
          %266 = vst [vmem:[%s251 + $0x8] sm:$0xff] 0.0
        $region44: #{tpu_custom_call.1} parent=35 // pred_fallthru
          _
        %v267 = vlaneseq
        %v268 = vand.u32 %v267, 127
        %v269 = vadd.s32 %v268, 128
        %v270 = vand.u32 %v268, 15
        %v271 = vand.u32 %v269, 15
        %s272 = smul.u32 %s26, 8
        %s273 = sshra.s32 %s272, 3
        %s274 = sand.u32 %s272, 7
        %s275 = smul.u32 %s273, 2
        %s276 = smul.addr %s275, 8
        %s277 = scalar_lea.vmem %s219, %s276 [#allocation2]
        %v278 = vld [vmem:[%s277] sm:$0xff]
        %v279 = vld [vmem:[%s277 + $0x8] sm:$0xff]
        %v280 = vld [vmem:[%s255] sm:$0xff]
        %281 = vrot.lane.b32.xlu0 %v278, 1
        %v282 = vpop.permute.xlu0 %281
        %283 = vrot.lane.b32.xlu0 %v279, 1
        %v284 = vpop.permute.xlu0 %283
        %vm285 = vcmp.lt.s32.totalorder %v268, 1
        %v286 = vsel %vm285, %v282, %v284
        %v287 = vsel %vm285, %v284, %v282
        %vm288 = vcmp.ge.s32.totalorder %v270, 1
        %vm289 = vcmp.ge.s32.totalorder %v271, 1
        %vm290 = vcmp.lt.s32.totalorder %v270, 16
        %vm291 = vcmp.lt.s32.totalorder %v271, 16
        %vm292 = vmand %vm288, %vm290
        %vm293 = vmand %vm289, %vm291
        %v294 = vsel %vm292, 1, 0
        %v295 = vsel %vm293, 1, 0
        %vm296 = vcmp.eq.s32.totalorder %v294, 1
        %vm297 = vcmp.eq.s32.totalorder %v295, 1
        %v298 = vsel %vm296, %v287, 0.0
        %v299 = vsel %vm297, %v286, 0.0
        %301 = vset.pattern.permute.xlu0 0
        %302 = vperm.xlu0 %301, %v280
        %v303 = vpop.permute.xlu0 %302
        %v305 = vmul.f32 %v303, %v298
        %v306 = vmul.f32 %v303, %v299
        %v307 = vadd.f32 %v305, 0.0
        %v308 = vadd.f32 %v306, 0.0
        %309 = vset.pattern.permute.xlu0 1
        %310 = vperm.xlu0 %309, %v280
        %v311 = vpop.permute.xlu0 %310
        %v313 = vmul.f32 %v311, %v278
        %v314 = vmul.f32 %v311, %v279
        %v315 = vadd.f32 %v307, %v313
        %v316 = vadd.f32 %v308, %v314
        %317 = vrot.lane.b32.xlu0 %v278, 127
        %v318 = vpop.permute.xlu0 %317
        %319 = vrot.lane.b32.xlu0 %v279, 127
        %v320 = vpop.permute.xlu0 %319
        %vm321 = vcmp.lt.s32.totalorder %v268, 127
        %v322 = vsel %vm321, %v318, %v320
        %v323 = vsel %vm321, %v320, %v318
        %vm324 = vcmp.ge.s32.totalorder %v270, 0
        %vm325 = vcmp.ge.s32.totalorder %v271, 0
        %vm326 = vcmp.lt.s32.totalorder %v270, 15
        %vm327 = vcmp.lt.s32.totalorder %v271, 15
        %vm328 = vmand %vm324, %vm326
        %vm329 = vmand %vm325, %vm327
        %v330 = vsel %vm328, 1, 0
        %v331 = vsel %vm329, 1, 0
        %vm332 = vcmp.eq.s32.totalorder %v330, 1
        %vm333 = vcmp.eq.s32.totalorder %v331, 1
        %v334 = vsel %vm332, %v322, 0.0
        %v335 = vsel %vm333, %v323, 0.0
        %336 = vset.pattern.permute.xlu0 2
        %337 = vperm.xlu0 %336, %v280
        %v338 = vpop.permute.xlu0 %337
        %v340 = vmul.f32 %v338, %v334
        %v341 = vmul.f32 %v338, %v335
        %v342 = vadd.f32 %v315, %v340
        %v343 = vadd.f32 %v316, %v341
        %344 = vset.pattern.permute.xlu0 3
        %345 = vperm.xlu0 %344, %v280
        %v346 = vpop.permute.xlu0 %345
        %v348 = vadd.f32 %v342, %v346
        %v349 = vadd.f32 %v343, %v346
        %350 = vrot.lane.b32.xlu0 %v348, 16
        %v351 = vpop.permute.xlu0 %350
        %352 = vrot.lane.b32.xlu0 %v349, 16
        %v353 = vpop.permute.xlu0 %352
        %vm354 = vcmp.lt.s32.totalorder %v268, 16
        %v355 = vsel %vm354, %v351, %v353
        %v356 = vsel %vm354, %v353, %v351
        %vm357 = vcmp.ge.s32.totalorder %v268, 16
        %vm358 = vcmp.ge.s32.totalorder %v269, 16
        %vm359 = vcmp.lt.s32.totalorder %v268, 256
        %vm360 = vcmp.lt.s32.totalorder %v269, 256
        %vm361 = vmand %vm357, %vm359
        %vm362 = vmand %vm358, %vm360
        %v363 = vsel %vm361, 1, 0
        %v364 = vsel %vm362, 1, 0
        %vm365 = vcmp.eq.s32.totalorder %v363, 1
        %vm366 = vcmp.eq.s32.totalorder %v364, 1
        %v367 = vsel %vm365, %v356, 0.0
        %v368 = vsel %vm366, %v355, 0.0
        %369 = vset.pattern.permute.xlu0 4
        %370 = vperm.xlu0 %369, %v280
        %v371 = vpop.permute.xlu0 %370
        %v373 = vmul.f32 %v371, %v367
        %v374 = vmul.f32 %v371, %v368
        %v375 = vadd.f32 %v373, 0.0
        %v376 = vadd.f32 %v374, 0.0
        %377 = vset.pattern.permute.xlu0 5
        %378 = vperm.xlu0 %377, %v280
        %v379 = vpop.permute.xlu0 %378
        %v381 = vmul.f32 %v379, %v348
        %v382 = vmul.f32 %v379, %v349
        %v383 = vadd.f32 %v375, %v381
        %v384 = vadd.f32 %v376, %v382
        %385 = vrot.lane.b32.xlu0 %v348, 112
        %v386 = vpop.permute.xlu0 %385
        %387 = vrot.lane.b32.xlu0 %v349, 112
        %v388 = vpop.permute.xlu0 %387
        %vm389 = vcmp.lt.s32.totalorder %v268, 112
        %v390 = vsel %vm389, %v386, %v388
        %v391 = vsel %vm389, %v388, %v386
        %vm392 = vcmp.ge.s32.totalorder %v268, 0
        %vm393 = vcmp.ge.s32.totalorder %v269, 0
        %vm394 = vcmp.lt.s32.totalorder %v268, 240
        %vm395 = vcmp.lt.s32.totalorder %v269, 240
        %vm396 = vmand %vm392, %vm394
        %vm397 = vmand %vm393, %vm395
        %v398 = vsel %vm396, 1, 0
        %v399 = vsel %vm397, 1, 0
        %vm400 = vcmp.eq.s32.totalorder %v398, 1
        %vm401 = vcmp.eq.s32.totalorder %v399, 1
        %v402 = vsel %vm400, %v390, 0.0
        %v403 = vsel %vm401, %v391, 0.0
        %404 = vset.pattern.permute.xlu0 6
        %405 = vperm.xlu0 %404, %v280
        %v406 = vpop.permute.xlu0 %405
        %v408 = vmul.f32 %v406, %v402
        %v409 = vmul.f32 %v406, %v403
        %v410 = vadd.f32 %v383, %v408
        %v411 = vadd.f32 %v384, %v409
        %412 = vset.pattern.permute.xlu0 7
        %413 = vperm.xlu0 %412, %v280
        %v414 = vpop.permute.xlu0 %413
        %v416 = vadd.f32 %v410, %v414
        %v417 = vadd.f32 %v411, %v414
        %418 = vrot.lane.b32.xlu0 %v416, 2
        %v419 = vpop.permute.xlu0 %418
        %420 = vrot.lane.b32.xlu0 %v417, 2
        %v421 = vpop.permute.xlu0 %420
        %vm422 = vcmp.lt.s32.totalorder %v268, 2
        %v423 = vsel %vm422, %v419, %v421
        %v424 = vsel %vm422, %v421, %v419
        %vm425 = vcmp.ge.s32.totalorder %v270, 2
        %vm426 = vcmp.ge.s32.totalorder %v271, 2
        %vm427 = vmand %vm425, %vm290
        %vm428 = vmand %vm426, %vm291
        %v429 = vsel %vm427, 1, 0
        %v430 = vsel %vm428, 1, 0
        %vm431 = vcmp.eq.s32.totalorder %v429, 1
        %vm432 = vcmp.eq.s32.totalorder %v430, 1
        %v433 = vsel %vm431, %v424, 0.0
        %v434 = vsel %vm432, %v423, 0.0
        %435 = vset.pattern.permute.xlu0 8
        %436 = vperm.xlu0 %435, %v280
        %v437 = vpop.permute.xlu0 %436
        %v439 = vmul.f32 %v437, %v433
        %v440 = vmul.f32 %v437, %v434
        %v441 = vadd.f32 %v439, 0.0
        %v442 = vadd.f32 %v440, 0.0
        %443 = vset.pattern.permute.xlu0 9
        %444 = vperm.xlu0 %443, %v280
        %v445 = vpop.permute.xlu0 %444
        %v447 = vmul.f32 %v445, %v416
        %v448 = vmul.f32 %v445, %v417
        %v449 = vadd.f32 %v441, %v447
        %v450 = vadd.f32 %v442, %v448
        %451 = vrot.lane.b32.xlu0 %v416, 126
        %v452 = vpop.permute.xlu0 %451
        %453 = vrot.lane.b32.xlu0 %v417, 126
        %v454 = vpop.permute.xlu0 %453
        %vm455 = vcmp.lt.s32.totalorder %v268, 126
        %v456 = vsel %vm455, %v452, %v454
        %v457 = vsel %vm455, %v454, %v452
        %vm458 = vcmp.lt.s32.totalorder %v270, 14
        %vm459 = vcmp.lt.s32.totalorder %v271, 14
        %vm460 = vmand %vm324, %vm458
        %vm461 = vmand %vm325, %vm459
        %v462 = vsel %vm460, 1, 0
        %v463 = vsel %vm461, 1, 0
        %vm464 = vcmp.eq.s32.totalorder %v462, 1
        %vm465 = vcmp.eq.s32.totalorder %v463, 1
        %v466 = vsel %vm464, %v456, 0.0
        %v467 = vsel %vm465, %v457, 0.0
        %468 = vset.pattern.permute.xlu0 10
        %469 = vperm.xlu0 %468, %v280
        %v470 = vpop.permute.xlu0 %469
        %v472 = vmul.f32 %v470, %v466
        %v473 = vmul.f32 %v470, %v467
        %v474 = vadd.f32 %v449, %v472
        %v475 = vadd.f32 %v450, %v473
        %476 = vset.pattern.permute.xlu0 11
        %477 = vperm.xlu0 %476, %v280
        %v478 = vpop.permute.xlu0 %477
        %v480 = vadd.f32 %v474, %v478
        %v481 = vadd.f32 %v475, %v478
        %482 = vrot.lane.b32.xlu0 %v480, 32
        %v483 = vpop.permute.xlu0 %482
        %484 = vrot.lane.b32.xlu0 %v481, 32
        %v485 = vpop.permute.xlu0 %484
        %vm486 = vcmp.lt.s32.totalorder %v268, 32
        %v487 = vsel %vm486, %v483, %v485
        %v488 = vsel %vm486, %v485, %v483
        %vm489 = vcmp.ge.s32.totalorder %v268, 32
        %vm490 = vcmp.ge.s32.totalorder %v269, 32
        %vm491 = vmand %vm489, %vm359
        %vm492 = vmand %vm490, %vm360
        %v493 = vsel %vm491, 1, 0
        %v494 = vsel %vm492, 1, 0
        %vm495 = vcmp.eq.s32.totalorder %v493, 1
        %vm496 = vcmp.eq.s32.totalorder %v494, 1
        %v497 = vsel %vm495, %v488, 0.0
        %v498 = vsel %vm496, %v487, 0.0
        %499 = vset.pattern.permute.xlu0 12
        %500 = vperm.xlu0 %499, %v280
        %v501 = vpop.permute.xlu0 %500
        %v503 = vmul.f32 %v501, %v497
        %v504 = vmul.f32 %v501, %v498
        %v505 = vadd.f32 %v503, 0.0
        %v506 = vadd.f32 %v504, 0.0
        %507 = vset.pattern.permute.xlu0 13
        %508 = vperm.xlu0 %507, %v280
        %v509 = vpop.permute.xlu0 %508
        %v511 = vmul.f32 %v509, %v480
        %v512 = vmul.f32 %v509, %v481
        %v513 = vadd.f32 %v505, %v511
        %v514 = vadd.f32 %v506, %v512
        %515 = vrot.lane.b32.xlu0 %v480, 96
        %v516 = vpop.permute.xlu0 %515
        %517 = vrot.lane.b32.xlu0 %v481, 96
        %v518 = vpop.permute.xlu0 %517
        %vm519 = vcmp.lt.s32.totalorder %v268, 96
        %v520 = vsel %vm519, %v516, %v518
        %v521 = vsel %vm519, %v518, %v516
        %vm522 = vcmp.lt.s32.totalorder %v268, 224
        %vm523 = vcmp.lt.s32.totalorder %v269, 224
        %vm524 = vmand %vm392, %vm522
        %vm525 = vmand %vm393, %vm523
        %v526 = vsel %vm524, 1, 0
        %v527 = vsel %vm525, 1, 0
        %vm528 = vcmp.eq.s32.totalorder %v526, 1
        %vm529 = vcmp.eq.s32.totalorder %v527, 1
        %v530 = vsel %vm528, %v520, 0.0
        %v531 = vsel %vm529, %v521, 0.0
        %532 = vset.pattern.permute.xlu0 14
        %533 = vperm.xlu0 %532, %v280
        %v534 = vpop.permute.xlu0 %533
        %v536 = vmul.f32 %v534, %v530
        %v537 = vmul.f32 %v534, %v531
        %v538 = vadd.f32 %v513, %v536
        %v539 = vadd.f32 %v514, %v537
        %540 = vset.pattern.permute.xlu0 15
        %541 = vperm.xlu0 %540, %v280
        %v542 = vpop.permute.xlu0 %541
        %v544 = vadd.f32 %v538, %v542
        %v545 = vadd.f32 %v539, %v542
        %v546 = vld [vmem:[%s259] sm:$0xff]
        %v547 = vpack.c.bf16 %v546, %v546
        %v548 = vld [vmem:[%s251] sm:$0xff]
        %v549 = vld [vmem:[%s251 + $0x8] sm:$0xff]
        %v550 = vpack.c.bf16 %v544, %v544
        %v551 = vpack.c.bf16 %v545, %v545
        %552 = vxpose.xlu0.c.b16.start [1/8] %v547, 128
        %553 = vxpose.xlu0.c.b16.cont [2/8] 0, 128
        %554 = vxpose.xlu0.c.b16.cont [3/8] 0, 128
        %555 = vxpose.xlu0.c.b16.cont [4/8] 0, 128
        %556 = vxpose.xlu0.c.b16.cont [5/8] 0, 128
        %557 = vxpose.xlu0.c.b16.cont [6/8] 0, 128
        %558 = vxpose.xlu0.c.b16.cont [7/8] 0, 128
        %559 = vxpose.xlu0.c.b16.end [8/8] 0, 128
        %v560 = vpop.trf.xlu0
        %v561 = vpop.trf.xlu0
        %v562 = vpop.trf.xlu0
        %v563 = vpop.trf.xlu0
        %v564 = vpop.trf.xlu0
        %v565 = vpop.trf.xlu0
        %v566 = vpop.trf.xlu0
        %v567 = vpop.trf.xlu0
        %vm568 = vcmask 64512
        %v570 = vsel %vm568, %v560, 0
        %vm572 = vcmask 1043456
        %v574 = vsel %vm572, %v550, 0
        %v577 = vsel %vm572, %v551, 0
        %579 = vmatprep.subr.bf16.mxu0 %v577
        %580 = vmatpush1.bf16.msra.mxu0 %v574
        %581 = vmatprep.subr.bf16.mxu0 0
        %582 = vmatpush1.bf16.msra.mxu0 0
        %583 = vmatprep.subr.bf16.mxu0 0
        %584 = vmatpush1.bf16.msra.mxu0 0
        %585 = vmatprep.subr.bf16.mxu0 0
        %586 = vmatpush1.bf16.msra.mxu0 0
        %587 = vmatprep.subr.bf16.mxu0 0
        %588 = vmatpush1.bf16.msra.mxu0 0
        %589 = vmatprep.subr.bf16.mxu0 0
        %590 = vmatpush1.bf16.msra.mxu0 0
        %591 = vmatprep.subr.bf16.mxu0 0
        %592 = vmatpush1.bf16.msra.mxu0 0
        %593 = vmatprep.subr.bf16.mxu0 0
        %594 = vmatpush1.bf16.msra.mxu0 0
        %595 = vmatprep.subr.bf16.mxu0 0
        %596 = vmatpush1.bf16.msra.mxu0 0
        %597 = vmatprep.subr.bf16.mxu0 0
        %598 = vmatpush1.bf16.msra.mxu0 0
        %599 = vmatprep.subr.bf16.mxu0 0
        %600 = vmatpush1.bf16.msra.mxu0 0
        %601 = vmatprep.subr.bf16.mxu0 0
        %602 = vmatpush1.bf16.msra.mxu0 0
        %603 = vmatprep.subr.bf16.mxu0 0
        %604 = vmatpush1.bf16.msra.mxu0 0
        %605 = vmatprep.subr.bf16.mxu0 0
        %606 = vmatpush1.bf16.msra.mxu0 0
        %607 = vmatprep.subr.bf16.mxu0 0
        %608 = vmatpush1.bf16.msra.mxu0 0
        %609 = vmatprep.subr.bf16.mxu0 0
        %610 = vmatpush1.bf16.msra.mxu0 0
        %611 = vmatprep.mubr.bf16.mxu0 0
        %612 = vmatmul.mubr.bf16.gmra.mrb[0].mxu0 %v570
        %v613 = vpop.f32.mrb[0].mxu0
        %v614 = vadd.f32 0.0, %v613
        %v615 = vpop.f32.mrb[0].mxu0
        %v616 = vadd.f32 0.0, %v615
        %v617 = vpop.f32.mrb[0].mxu0
        %v618 = vpop.f32.mrb[0].mxu0
        %619 = vdwg.mxu0
        %v620 = vadd.f32 %v548, %v614
        %v621 = vadd.f32 %v549, %v616
        %622 = vst [vmem:[%s251] sm:$0xff] %v620
        %623 = vst [vmem:[%s251 + $0x8] sm:$0xff] %v621
        // Predicated region
        $region45: #{tpu_custom_call.1} parent=35 // pred_check
          %p624 = pneg %p261
        $region46: #{tpu_custom_call.1} parent=35 // pred_check_branch
          %626 = sbr.rel (%p624) target = $region48
        $region47: #{tpu_custom_call.1} parent=35 // pred_region
          %v627 = vld [vmem:[%s219] sm:$0xff]
          %v628 = vld [vmem:[%s219 + $0x8] sm:$0xff]
          %v629 = vld [vmem:[%s251] sm:$0xff]
          %v630 = vld [vmem:[%s251 + $0x8] sm:$0xff]
          %v631 = vld [vmem:[%s3] sm:$0xff]
          %633 = vset.pattern.permute.xlu0 0
          %634 = vperm.xlu0 %633, %v631
          %v635 = vpop.permute.xlu0 %634
          %v637 = vadd.f32 %v629, %v635
          %v638 = vadd.f32 %v630, %v635
          %v639 = vmul.f32 %v627, %v637
          %v640 = vmul.f32 %v628, %v638
          %641 = vst [vmem:[%s251] sm:$0xff] %v639
          %642 = vst [vmem:[%s251 + $0x8] sm:$0xff] %v640
        $region48: #{tpu_custom_call.1} parent=35 // pred_fallthru
          _
        %s643 = sand.u32 %s140, 1
        %s644 = scalar_lea.sflag [#allocation4], %s643
        %s645 = sand.u32 %s140, 1
        %s646 = smul.addr %s645, 16
        %s647 = scalar_lea.vmem [#allocation5], %s646
        // Predicated region
        $region49: #{tpu_custom_call.1} parent=35 // pred_check
          %p648 = pneg %p150
        $region50: #{tpu_custom_call.1} parent=35 // pred_check_branch
          %650 = sbr.rel (%p648) target = $region52
        $region51: #{tpu_custom_call.1} parent=35 // pred_region
          %s652 = ssub.s32 256, 256
          %653 = vsyncadd %s644, %s652
          %s654 = smul.addr %s25, 2
          %s655 = smul.addr %s654, 128
          %s656 = scalar_lea.hbm %s4, %s655
          %s658 = sshll.u32 %s647, 4
          %s659 = int_to_ptr.vmem [resolvable:$true] %s658
          %661 = dma.vmem_to_hbm [thread:$0]  %s659, 256, %s656, %s644
        $region52: #{tpu_custom_call.1} parent=35 // pred_fallthru
          _
      $region36: #{tpu_custom_call.1} parent=5 // pred_fallthru
        _
      %p662 = scmp.le.s32.totalorder 2, %s16
      // Predicated region
      $region53: #{tpu_custom_call.1} parent=5 // pred_check
        %p663 = pneg %p662
      $region54: #{tpu_custom_call.1} parent=5 // pred_check_branch
        %665 = sbr.rel (%p663) target = $region56
      $region55: #{tpu_custom_call.1} parent=5 // pred_region
        %s666 = ssub.s32 %s16, 2
        // Predicated region
        $region57: #{tpu_custom_call.1} parent=55 // pred_check
          %p667 = pneg %p156
        $region58: #{tpu_custom_call.1} parent=55 // pred_check_branch
          %669 = sbr.rel (%p667) target = $region60
        $region59: #{tpu_custom_call.1} parent=55 // pred_region
          %s670 = sand.u32 %s141, 1
          %s671 = scalar_lea.sflag [#allocation4], %s670
          %s672 = sand.u32 %s141, 1
          %s673 = smul.addr %s672, 16
          %s674 = scalar_lea.vmem [#allocation5], %s673
          %675 = dma.done %s671, 256
        $region60: #{tpu_custom_call.1} parent=55 // pred_fallthru
          _
      $region56: #{tpu_custom_call.1} parent=5 // pred_fallthru
        _
    $region6: #{tpu_custom_call.1} parent=1 // loop_footer
      %s20 = sadd.s32 1, %s16
    $region7: #{tpu_custom_call.1} parent=1 // loop_footer_branch
      %15 = sbr.rel target = $region3
    $region8: #{tpu_custom_call.1} parent=1 // loop_exit
      _
    %676 = vsyncpa [#allocation3], 1
    %s677 = scalar_lea.sflag [#allocation3], 1
    %678 = vsyncpa %s677, 1
    %679 = vsyncpa [#allocation4], 1
    %s680 = scalar_lea.sflag [#allocation4], 1
    %681 = vsyncpa %s680, 1

</llo_original>
